<compile_context>
chip_gen: v5e
topology: v5e:2x2
jax: 0.10.0
libtpu: 0.0.40
codegen_flags: <defaults>
</compile_context>

<pallas_src>
import math

import jax
import jax.numpy as jnp
import numpy as np
from jax import lax
from jax.experimental import pallas as pl
from jax.experimental.pallas import tpu as pltpu


# ---------------------------------------------------------------------------
# BN folding (inference): conv -> BN  ==>  conv with scaled weight + bias
# ---------------------------------------------------------------------------
def _fold_bn(w, gamma, beta, mean, var, eps=1e-5):
    scale = gamma / jnp.sqrt(var + eps)
    w_f = w * scale[:, None, None, None]
    b_f = beta - mean * scale
    return w_f, b_f


# ---------------------------------------------------------------------------
# fused ResNetBlock kernel (per lane block = a contiguous group of images)
# ---------------------------------------------------------------------------
def _make_kernel(W, c2, L, has_sc_conv, mxu_dtype):
    taps = [(dh, dw) for dh in (-1, 0, 1) for dw in (-1, 0, 1)]
    center = 4  # taps[4] == (0, 0)

    def silu(v):
        # exp on the EUP, approx reciprocal on the EUP -> no f32 VALU divide.
        return v * pl.reciprocal(1.0 + jnp.exp(-v), approx=True)

    def kernel(x_ref, mask_ref, w1_ref, b1_ref, w2_ref, b2_ref,
               w3_ref, b3_ref, *rest):
        if has_sc_conv:
            wsc_ref, bsc_ref, o_ref = rest
        else:
            (o_ref,) = rest

        x = x_ref[...]                                  # (c1, L) f32
        x_m = x.astype(mxu_dtype)

        # ---- cv1: 1x1 conv (BN folded) + SiLU --------------------------- #
        y1 = silu(jnp.dot(w1_ref[...], x_m,
                          preferred_element_type=jnp.float32) + b1_ref[...])

        # ---- cv2: 3x3 conv (pad=1) as ONE matmul + 8 lane-rotates ------- #
        # z[(k*c2 + co), p] = sum_ci W2[co, ci, tap k] * y1[ci, p]
        z = jnp.dot(w2_ref[...], y1.astype(mxu_dtype),
                    preferred_element_type=jnp.float32)          # (9*c2, L)
        acc = z[center * c2:(center + 1) * c2, :]                # tap (0, 0)
        for k, (dh, dw) in enumerate(taps):
            off = dh * W + dw
            if off == 0:
                continue
            # shifted[:, p] = z_k[:, p + off]; mask zeroes out-of-image and
            # cross-image positions (the rotate's wrap-around lanes).
            shifted = pltpu.roll(z[k * c2:(k + 1) * c2, :], (-off) % L, axis=1)
            acc = acc + shifted * mask_ref[pl.ds(k, 1), :]
        y2 = silu(acc + b2_ref[...])                             # (c2, L)

        # ---- cv3: 1x1 conv (BN folded), no activation ------------------- #
        y3 = jnp.dot(w3_ref[...], y2.astype(mxu_dtype),
                     preferred_element_type=jnp.float32) + b3_ref[...]

        # ---- shortcut: 1x1 conv + BN (folded) or identity --------------- #
        if has_sc_conv:
            sc = jnp.dot(wsc_ref[...], x_m,
                         preferred_element_type=jnp.float32) + bsc_ref[...]
        else:
            sc = x

        o_ref[...] = jnp.maximum(y3 + sc, 0.0)

    return kernel


def resnet_block_pallas(x_nchw, params, s=1, *, num_lane_blocks=1,
                        mxu_dtype=jnp.bfloat16):
    """Fused ResNetBlock forward.

    x_nchw: (bs, c1, H, W) float32.
    num_lane_blocks: how many "parallel" grid steps to split the lane axis
      into (1 for v5e/v6e; 2 on v7x so both TensorCores get work).
    """
    if s != 1:
        # TODO(synk): stride>1 downsampling path not implemented in the fused kernel.
        raise NotImplementedError("stride > 1 not supported in the Pallas path")

    bs, c1, H, W = x_nchw.shape
    c2 = params["w1"].shape[0]
    c3 = params["w3"].shape[0]
    HW = H * W

    G = int(num_lane_blocks)
    assert bs % G == 0, "num_lane_blocks must divide the batch size"
    imgs_per_block = bs // G
    L = imgs_per_block * HW               # lanes processed per grid step
    if G > 1:
        assert L % 128 == 0, "lane block must be a multiple of 128 lanes"

    # channels-first, batch folded into lanes: (c1, bs*HW).  The transpose is
    # a tiny host/XLA-side relayout outside the kernel.
    x_cf = jnp.transpose(x_nchw.reshape(bs, c1, HW), (1, 0, 2)).reshape(c1, bs * HW)

    # fold BN into conv weights/biases (host-side, once); MXU operands -> bf16.
    w1f, b1f = _fold_bn(params["w1"], *params["bn1"])
    w2f, b2f = _fold_bn(params["w2"], *params["bn2"])
    w3f, b3f = _fold_bn(params["w3"], *params["bn3"])
    w1m = w1f.reshape(c2, c1).astype(mxu_dtype)
    # (c2_out, c2_in, kh, kw) -> rows = (tap = kh*3+kw, c2_out), cols = c2_in
    w2m = jnp.transpose(w2f, (2, 3, 0, 1)).reshape(9 * c2, c2).astype(mxu_dtype)
    w3m = w3f.reshape(c3, c2).astype(mxu_dtype)

    has_sc_conv = "wsc" in params
    if not has_sc_conv:
        assert c1 == c3, "identity shortcut requires c1 == e*c2"

    # trace-time border-validity masks for the 9 taps, tiled over the images
    # that share one lane block (also kills rotate wrap-around across images).
    hh = np.arange(HW) // W
    ww = np.arange(HW) % W
    taps = [(dh, dw) for dh in (-1, 0, 1) for dw in (-1, 0, 1)]
    mask_img = np.stack(
        [((hh + dh >= 0) & (hh + dh < H) & (ww + dw >= 0) & (ww + dw < W))
         .astype(np.float32) for dh, dw in taps])                 # (9, HW)
    masks = jnp.asarray(np.tile(mask_img, (1, imgs_per_block)))   # (9, L)

    inputs = [x_cf, masks,
              w1m, b1f.reshape(c2, 1).astype(jnp.float32),
              w2m, b2f.reshape(c2, 1).astype(jnp.float32),
              w3m, b3f.reshape(c3, 1).astype(jnp.float32)]
    in_specs = [
        pl.BlockSpec((c1, L), lambda i: (0, i)),
        pl.BlockSpec((9, L), lambda i: (0, 0)),
        pl.BlockSpec((c2, c1), lambda i: (0, 0)),
        pl.BlockSpec((c2, 1), lambda i: (0, 0)),
        pl.BlockSpec((9 * c2, c2), lambda i: (0, 0)),
        pl.BlockSpec((c2, 1), lambda i: (0, 0)),
        pl.BlockSpec((c3, c2), lambda i: (0, 0)),
        pl.BlockSpec((c3, 1), lambda i: (0, 0)),
    ]
    if has_sc_conv:
        wscf, bscf = _fold_bn(params["wsc"], *params["bnsc"])
        inputs += [wscf.reshape(c3, c1).astype(mxu_dtype),
                   bscf.reshape(c3, 1).astype(jnp.float32)]
        in_specs += [pl.BlockSpec((c3, c1), lambda i: (0, 0)),
                     pl.BlockSpec((c3, 1), lambda i: (0, 0))]

    flops = 2 * bs * HW * (c1 * c2 + 9 * c2 * c2 + c2 * c3
                           + (c1 * c3 if has_sc_conv else 0))
    bytes_accessed = (4 * bs * HW * (c1 + c3)                 # x in + out
                      + 4 * 9 * L                             # masks
                      + 2 * (c2 * c1 + 9 * c2 * c2 + c3 * c2
                             + (c3 * c1 if has_sc_conv else 0))
                      + 4 * (2 * c2 + c3 + (c3 if has_sc_conv else 0)))
    cost = pl.CostEstimate(flops=int(flops),
                           transcendentals=int(2 * bs * HW * c2),
                           bytes_accessed=int(bytes_accessed))

    # TODO(synk): for production shapes (large C, H*W) add lane/HW tiling with
    # a 1-row halo for cv2 and re-derive the VMEM budget (v7x: 64 MiB physical).
    kernel = _make_kernel(W, c2, L, has_sc_conv, mxu_dtype)
    out_cf = pl.pallas_call(
        kernel,
        out_shape=jax.ShapeDtypeStruct((c3, bs * HW), jnp.float32),
        grid=(G,),
        in_specs=in_specs,
        out_specs=pl.BlockSpec((c3, L), lambda i: (0, i)),
        compiler_params=pltpu.CompilerParams(
            dimension_semantics=("parallel",),
            vmem_limit_bytes=32 * 1024 * 1024),
        cost_estimate=cost,
    )(*inputs)

    return out_cf.reshape(c3, bs, HW).transpose(1, 0, 2).reshape(bs, c3, H, W)


# ---------------------------------------------------------------------------
# Pure-JAX reference (mirrors the PyTorch forward, un-folded BN, f32)
# ---------------------------------------------------------------------------
def reference(x, p, s=1):
    def conv_bn_act(x, w, bn, stride, pad, act):
        y = lax.conv_general_dilated(
            x, w, window_strides=(stride, stride),
            padding=[(pad, pad), (pad, pad)],
            dimension_numbers=("NCHW", "OIHW", "NCHW"))
        g, b, m, v = bn
        y = (y - m[None, :, None, None]) / jnp.sqrt(v[None, :, None, None] + 1e-5)
        y = y * g[None, :, None, None] + b[None, :, None, None]
        if act:
            y = y * jax.nn.sigmoid(y)        # SiLU
        return y

    y = conv_bn_act(x, p["w1"], p["bn1"], 1, 0, True)
    y = conv_bn_act(y, p["w2"], p["bn2"], s, 1, True)
    y = conv_bn_act(y, p["w3"], p["bn3"], 1, 0, False)
    if "wsc" in p:
        sc = conv_bn_act(x, p["wsc"], p["bnsc"], s, 0, False)
    else:
        sc = x
    return jnp.maximum(y + sc, 0.0)


# ---------------------------------------------------------------------------
# main
# ---------------------------------------------------------------------------
if __name__ == "__main__":
    # ResNetBlock(c1=8, c2=4, s=1, e=4) -> c3 = 16, shortcut is a 1x1 conv.
    bs, c1, c2, e, H, W, s = 2, 8, 4, 4, 16, 16, 1
    c3 = e * c2

    key = jax.random.PRNGKey(0)
    ks = jax.random.split(key, 10)

    def bn_params(k, c):
        k1, k2, k3, k4 = jax.random.split(k, 4)
        gamma = 1.0 + 0.1 * jax.random.normal(k1, (c,), jnp.float32)
        beta = 0.1 * jax.random.normal(k2, (c,), jnp.float32)
        mean = 0.1 * jax.random.normal(k3, (c,), jnp.float32)
        var = 0.5 + jax.random.uniform(k4, (c,), jnp.float32)
        return (gamma, beta, mean, var)

    params = {
        "w1": jax.random.normal(ks[0], (c2, c1, 1, 1), jnp.float32) / math.sqrt(c1),
        "bn1": bn_params(ks[1], c2),
        "w2": jax.random.normal(ks[2], (c2, c2, 3, 3), jnp.float32) / math.sqrt(9 * c2),
        "bn2": bn_params(ks[3], c2),
        "w3": jax.random.normal(ks[4], (c3, c2, 1, 1), jnp.float32) / math.sqrt(c2),
        "bn3": bn_params(ks[5], c3),
        "wsc": jax.random.normal(ks[6], (c3, c1, 1, 1), jnp.float32) / math.sqrt(c1),
        "bnsc": bn_params(ks[7], c3),
    }
    x = jax.random.normal(ks[8], (bs, c1, H, W), jnp.float32)

    ref = jax.block_until_ready(reference(x, params, s=s))

    # Tolerance reflects bf16 MXU operands (+ approx EUP reciprocal in SiLU)
    # vs. the pure-f32 reference; accumulation / elementwise math stay f32.
    RTOL, ATOL = 2e-2, 5e-2

    # 1) primary config: whole batch folded into lanes, single grid step
    #    (best on v5e / v6e, which have one TensorCore).
    out = resnet_block_pallas(x, params, s=s, num_lane_blocks=1)
    out = jax.block_until_ready(out)
    np.testing.assert_allclose(np.asarray(out), np.asarray(ref),
                               rtol=RTOL, atol=ATOL)
    assert out.shape == (bs, c3, H, W)

    # 2) v7x-style config: 2-wide "parallel" grid, one image-group per core.
    out2 = resnet_block_pallas(x, params, s=s, num_lane_blocks=2)
    out2 = jax.block_until_ready(out2)
    np.testing.assert_allclose(np.asarray(out2), np.asarray(ref),
                               rtol=RTOL, atol=ATOL)

    print("KERNEL_OK")
</pallas_src>

<mosaic_0001>
module attributes {stable_mosaic.version = 11 : i64} {
  func.func @kernel(%arg0: i32, %arg1: memref<8x512xf32, #tpu.memory_space<vmem>>, %arg2: memref<9x512xf32, #tpu.memory_space<vmem>>, %arg3: memref<4x8xbf16, #tpu.memory_space<vmem>>, %arg4: memref<4x1xf32, #tpu.memory_space<vmem>>, %arg5: memref<36x4xbf16, #tpu.memory_space<vmem>>, %arg6: memref<4x1xf32, #tpu.memory_space<vmem>>, %arg7: memref<16x4xbf16, #tpu.memory_space<vmem>>, %arg8: memref<16x1xf32, #tpu.memory_space<vmem>>, %arg9: memref<16x8xbf16, #tpu.memory_space<vmem>>, %arg10: memref<16x1xf32, #tpu.memory_space<vmem>>, %arg11: memref<16x512xf32, #tpu.memory_space<vmem>>) attributes {dimension_semantics = [#tpu.dimension_semantics<parallel>], iteration_bounds = array<i64: 1>, scalar_prefetch = 0 : i64, scratch_operands = 0 : i64, tpu.core_type = #tpu.core_type<tc>, window_params = [{transform_indices = @transform_0, window_bounds = array<i64: 8, 512>}, {pipeline_mode = #tpu.pipeline_mode<synchronous>, transform_indices = @transform_1, window_bounds = array<i64: 9, 512>}, {pipeline_mode = #tpu.pipeline_mode<synchronous>, transform_indices = @transform_2, window_bounds = array<i64: 4, 8>}, {pipeline_mode = #tpu.pipeline_mode<synchronous>, transform_indices = @transform_3, window_bounds = array<i64: 4, 1>}, {pipeline_mode = #tpu.pipeline_mode<synchronous>, transform_indices = @transform_4, window_bounds = array<i64: 36, 4>}, {pipeline_mode = #tpu.pipeline_mode<synchronous>, transform_indices = @transform_5, window_bounds = array<i64: 4, 1>}, {pipeline_mode = #tpu.pipeline_mode<synchronous>, transform_indices = @transform_6, window_bounds = array<i64: 16, 4>}, {pipeline_mode = #tpu.pipeline_mode<synchronous>, transform_indices = @transform_7, window_bounds = array<i64: 16, 1>}, {pipeline_mode = #tpu.pipeline_mode<synchronous>, transform_indices = @transform_8, window_bounds = array<i64: 16, 8>}, {pipeline_mode = #tpu.pipeline_mode<synchronous>, transform_indices = @transform_9, window_bounds = array<i64: 16, 1>}, {transform_indices = @transform_10, window_bounds = array<i64: 16, 512>}]} {
    %c0 = arith.constant 0 : index
    %c0_0 = arith.constant 0 : index
    %0 = vector.load %arg1[%c0, %c0_0] : memref<8x512xf32, #tpu.memory_space<vmem>>, vector<8x512xf32>
    %1 = arith.truncf %0 : vector<8x512xf32> to vector<8x512xbf16>
    %c0_1 = arith.constant 0 : index
    %c0_2 = arith.constant 0 : index
    %2 = vector.load %arg3[%c0_1, %c0_2] : memref<4x8xbf16, #tpu.memory_space<vmem>>, vector<4x8xbf16>
    %cst = arith.constant dense<0.000000e+00> : vector<4x512xf32>
    %3 = tpu.matmul %2, %1, %cst {dimension_numbers = #tpu.dot_dimension_numbers<[1], [0], [0], [1], [0, 0, 1, 1], [], []>} : vector<4x8xbf16>, vector<8x512xbf16>, vector<4x512xf32> -> vector<4x512xf32>
    %c0_3 = arith.constant 0 : index
    %c0_4 = arith.constant 0 : index
    %4 = vector.load %arg4[%c0_3, %c0_4] : memref<4x1xf32, #tpu.memory_space<vmem>>, vector<4x1xf32>
    %5 = vector.broadcast %4 : vector<4x1xf32> to vector<4x512xf32>
    %6 = arith.addf %3, %5 : vector<4x512xf32>
    %cst_5 = arith.constant 0.000000e+00 : f32
    %7 = vector.broadcast %cst_5 : f32 to vector<4x512xf32>
    %8 = arith.subf %7, %6 : vector<4x512xf32>
    %9 = math.exp %8 : vector<4x512xf32>
    %cst_6 = arith.constant 1.000000e+00 : f32
    %10 = vector.broadcast %cst_6 : f32 to vector<4x512xf32>
    %11 = arith.addf %10, %9 : vector<4x512xf32>
    %12 = tpu.reciprocal %11 {approx = true} : vector<4x512xf32> -> vector<4x512xf32>
    %13 = arith.mulf %6, %12 : vector<4x512xf32>
    %c0_7 = arith.constant 0 : index
    %c0_8 = arith.constant 0 : index
    %14 = vector.load %arg5[%c0_7, %c0_8] : memref<36x4xbf16, #tpu.memory_space<vmem>>, vector<36x4xbf16>
    %15 = arith.truncf %13 : vector<4x512xf32> to vector<4x512xbf16>
    %cst_9 = arith.constant dense<0.000000e+00> : vector<36x512xf32>
    %16 = tpu.matmul %14, %15, %cst_9 {dimension_numbers = #tpu.dot_dimension_numbers<[1], [0], [0], [1], [0, 0, 1, 1], [], []>} : vector<36x4xbf16>, vector<4x512xbf16>, vector<36x512xf32> -> vector<36x512xf32>
    %17 = vector.extract_strided_slice %16 {offsets = [16, 0], sizes = [4, 512], strides = [1, 1]} : vector<36x512xf32> to vector<4x512xf32>
    %18 = vector.extract_strided_slice %16 {offsets = [0, 0], sizes = [4, 512], strides = [1, 1]} : vector<36x512xf32> to vector<4x512xf32>
    %c17_i32 = arith.constant 17 : i32
    %19 = tpu.dynamic_rotate %18 by %c17_i32 dim 1 : vector<4x512xf32>, i32 -> vector<4x512xf32>
    %c0_10 = arith.constant 0 : index
    %c0_11 = arith.constant 0 : index
    %20 = vector.load %arg2[%c0_10, %c0_11] : memref<9x512xf32, #tpu.memory_space<vmem>>, vector<1x512xf32>
    %21 = vector.broadcast %20 : vector<1x512xf32> to vector<4x512xf32>
    %22 = arith.mulf %19, %21 : vector<4x512xf32>
    %23 = arith.addf %17, %22 : vector<4x512xf32>
    %24 = vector.extract_strided_slice %16 {offsets = [4, 0], sizes = [4, 512], strides = [1, 1]} : vector<36x512xf32> to vector<4x512xf32>
    %c16_i32 = arith.constant 16 : i32
    %25 = tpu.dynamic_rotate %24 by %c16_i32 dim 1 : vector<4x512xf32>, i32 -> vector<4x512xf32>
    %c1 = arith.constant 1 : index
    %c0_12 = arith.constant 0 : index
    %26 = vector.load %arg2[%c1, %c0_12] : memref<9x512xf32, #tpu.memory_space<vmem>>, vector<1x512xf32>
    %27 = vector.broadcast %26 : vector<1x512xf32> to vector<4x512xf32>
    %28 = arith.mulf %25, %27 : vector<4x512xf32>
    %29 = arith.addf %23, %28 : vector<4x512xf32>
    %30 = vector.extract_strided_slice %16 {offsets = [8, 0], sizes = [4, 512], strides = [1, 1]} : vector<36x512xf32> to vector<4x512xf32>
    %c15_i32 = arith.constant 15 : i32
    %31 = tpu.dynamic_rotate %30 by %c15_i32 dim 1 : vector<4x512xf32>, i32 -> vector<4x512xf32>
    %c2 = arith.constant 2 : index
    %c0_13 = arith.constant 0 : index
    %32 = vector.load %arg2[%c2, %c0_13] : memref<9x512xf32, #tpu.memory_space<vmem>>, vector<1x512xf32>
    %33 = vector.broadcast %32 : vector<1x512xf32> to vector<4x512xf32>
    %34 = arith.mulf %31, %33 : vector<4x512xf32>
    %35 = arith.addf %29, %34 : vector<4x512xf32>
    %36 = vector.extract_strided_slice %16 {offsets = [12, 0], sizes = [4, 512], strides = [1, 1]} : vector<36x512xf32> to vector<4x512xf32>
    %c1_i32 = arith.constant 1 : i32
    %37 = tpu.dynamic_rotate %36 by %c1_i32 dim 1 : vector<4x512xf32>, i32 -> vector<4x512xf32>
    %c3 = arith.constant 3 : index
    %c0_14 = arith.constant 0 : index
    %38 = vector.load %arg2[%c3, %c0_14] : memref<9x512xf32, #tpu.memory_space<vmem>>, vector<1x512xf32>
    %39 = vector.broadcast %38 : vector<1x512xf32> to vector<4x512xf32>
    %40 = arith.mulf %37, %39 : vector<4x512xf32>
    %41 = arith.addf %35, %40 : vector<4x512xf32>
    %42 = vector.extract_strided_slice %16 {offsets = [20, 0], sizes = [4, 512], strides = [1, 1]} : vector<36x512xf32> to vector<4x512xf32>
    %c511_i32 = arith.constant 511 : i32
    %43 = tpu.dynamic_rotate %42 by %c511_i32 dim 1 : vector<4x512xf32>, i32 -> vector<4x512xf32>
    %c5 = arith.constant 5 : index
    %c0_15 = arith.constant 0 : index
    %44 = vector.load %arg2[%c5, %c0_15] : memref<9x512xf32, #tpu.memory_space<vmem>>, vector<1x512xf32>
    %45 = vector.broadcast %44 : vector<1x512xf32> to vector<4x512xf32>
    %46 = arith.mulf %43, %45 : vector<4x512xf32>
    %47 = arith.addf %41, %46 : vector<4x512xf32>
    %48 = vector.extract_strided_slice %16 {offsets = [24, 0], sizes = [4, 512], strides = [1, 1]} : vector<36x512xf32> to vector<4x512xf32>
    %c497_i32 = arith.constant 497 : i32
    %49 = tpu.dynamic_rotate %48 by %c497_i32 dim 1 : vector<4x512xf32>, i32 -> vector<4x512xf32>
    %c6 = arith.constant 6 : index
    %c0_16 = arith.constant 0 : index
    %50 = vector.load %arg2[%c6, %c0_16] : memref<9x512xf32, #tpu.memory_space<vmem>>, vector<1x512xf32>
    %51 = vector.broadcast %50 : vector<1x512xf32> to vector<4x512xf32>
    %52 = arith.mulf %49, %51 : vector<4x512xf32>
    %53 = arith.addf %47, %52 : vector<4x512xf32>
    %54 = vector.extract_strided_slice %16 {offsets = [28, 0], sizes = [4, 512], strides = [1, 1]} : vector<36x512xf32> to vector<4x512xf32>
    %c496_i32 = arith.constant 496 : i32
    %55 = tpu.dynamic_rotate %54 by %c496_i32 dim 1 : vector<4x512xf32>, i32 -> vector<4x512xf32>
    %c7 = arith.constant 7 : index
    %c0_17 = arith.constant 0 : index
    %56 = vector.load %arg2[%c7, %c0_17] : memref<9x512xf32, #tpu.memory_space<vmem>>, vector<1x512xf32>
    %57 = vector.broadcast %56 : vector<1x512xf32> to vector<4x512xf32>
    %58 = arith.mulf %55, %57 : vector<4x512xf32>
    %59 = arith.addf %53, %58 : vector<4x512xf32>
    %60 = vector.extract_strided_slice %16 {offsets = [32, 0], sizes = [4, 512], strides = [1, 1]} : vector<36x512xf32> to vector<4x512xf32>
    %c495_i32 = arith.constant 495 : i32
    %61 = tpu.dynamic_rotate %60 by %c495_i32 dim 1 : vector<4x512xf32>, i32 -> vector<4x512xf32>
    %c8 = arith.constant 8 : index
    %c0_18 = arith.constant 0 : index
    %62 = vector.load %arg2[%c8, %c0_18] : memref<9x512xf32, #tpu.memory_space<vmem>>, vector<1x512xf32>
    %63 = vector.broadcast %62 : vector<1x512xf32> to vector<4x512xf32>
    %64 = arith.mulf %61, %63 : vector<4x512xf32>
    %65 = arith.addf %59, %64 : vector<4x512xf32>
    %c0_19 = arith.constant 0 : index
    %c0_20 = arith.constant 0 : index
    %66 = vector.load %arg6[%c0_19, %c0_20] : memref<4x1xf32, #tpu.memory_space<vmem>>, vector<4x1xf32>
    %67 = vector.broadcast %66 : vector<4x1xf32> to vector<4x512xf32>
    %68 = arith.addf %65, %67 : vector<4x512xf32>
    %cst_21 = arith.constant 0.000000e+00 : f32
    %69 = vector.broadcast %cst_21 : f32 to vector<4x512xf32>
    %70 = arith.subf %69, %68 : vector<4x512xf32>
    %71 = math.exp %70 : vector<4x512xf32>
    %cst_22 = arith.constant 1.000000e+00 : f32
    %72 = vector.broadcast %cst_22 : f32 to vector<4x512xf32>
    %73 = arith.addf %72, %71 : vector<4x512xf32>
    %74 = tpu.reciprocal %73 {approx = true} : vector<4x512xf32> -> vector<4x512xf32>
    %75 = arith.mulf %68, %74 : vector<4x512xf32>
    %c0_23 = arith.constant 0 : index
    %c0_24 = arith.constant 0 : index
    %76 = vector.load %arg7[%c0_23, %c0_24] : memref<16x4xbf16, #tpu.memory_space<vmem>>, vector<16x4xbf16>
    %77 = arith.truncf %75 : vector<4x512xf32> to vector<4x512xbf16>
    %cst_25 = arith.constant dense<0.000000e+00> : vector<16x512xf32>
    %78 = tpu.matmul %76, %77, %cst_25 {dimension_numbers = #tpu.dot_dimension_numbers<[1], [0], [0], [1], [0, 0, 1, 1], [], []>} : vector<16x4xbf16>, vector<4x512xbf16>, vector<16x512xf32> -> vector<16x512xf32>
    %c0_26 = arith.constant 0 : index
    %c0_27 = arith.constant 0 : index
    %79 = vector.load %arg8[%c0_26, %c0_27] : memref<16x1xf32, #tpu.memory_space<vmem>>, vector<16x1xf32>
    %80 = vector.broadcast %79 : vector<16x1xf32> to vector<16x512xf32>
    %81 = arith.addf %78, %80 : vector<16x512xf32>
    %c0_28 = arith.constant 0 : index
    %c0_29 = arith.constant 0 : index
    %82 = vector.load %arg9[%c0_28, %c0_29] : memref<16x8xbf16, #tpu.memory_space<vmem>>, vector<16x8xbf16>
    %cst_30 = arith.constant dense<0.000000e+00> : vector<16x512xf32>
    %83 = tpu.matmul %82, %1, %cst_30 {dimension_numbers = #tpu.dot_dimension_numbers<[1], [0], [0], [1], [0, 0, 1, 1], [], []>} : vector<16x8xbf16>, vector<8x512xbf16>, vector<16x512xf32> -> vector<16x512xf32>
    %c0_31 = arith.constant 0 : index
    %c0_32 = arith.constant 0 : index
    %84 = vector.load %arg10[%c0_31, %c0_32] : memref<16x1xf32, #tpu.memory_space<vmem>>, vector<16x1xf32>
    %85 = vector.broadcast %84 : vector<16x1xf32> to vector<16x512xf32>
    %86 = arith.addf %83, %85 : vector<16x512xf32>
    %87 = arith.addf %81, %86 : vector<16x512xf32>
    %cst_33 = arith.constant 0.000000e+00 : f32
    %88 = vector.broadcast %cst_33 : f32 to vector<16x512xf32>
    %89 = arith.maximumf %87, %88 : vector<16x512xf32>
    %c0_34 = arith.constant 0 : index
    %c0_35 = arith.constant 0 : index
    %90 = vector.load %arg11[%c0_34, %c0_35] : memref<16x512xf32, #tpu.memory_space<vmem>>, vector<16x512xf32>
    tpu.vector_store %arg11[%c0_34, %c0_35], %89 {strides = array<i32>} : memref<16x512xf32, #tpu.memory_space<vmem>>, vector<16x512xf32>,
    return
  }
  func.func @transform_0(%arg0: i32) -> (i32, i32) {
    %c0_i32 = arith.constant 0 : i32
    %c0_i32_0 = arith.constant 0 : i32
    return %c0_i32, %arg0 : i32, i32
  }
  func.func @transform_1(%arg0: i32) -> (i32, i32) {
    %c0_i32 = arith.constant 0 : i32
    %c0_i32_0 = arith.constant 0 : i32
    %c0_i32_1 = arith.constant 0 : i32
    return %c0_i32, %c0_i32_0 : i32, i32
  }
  func.func @transform_2(%arg0: i32) -> (i32, i32) {
    %c0_i32 = arith.constant 0 : i32
    %c0_i32_0 = arith.constant 0 : i32
    %c0_i32_1 = arith.constant 0 : i32
    return %c0_i32, %c0_i32_0 : i32, i32
  }
  func.func @transform_3(%arg0: i32) -> (i32, i32) {
    %c0_i32 = arith.constant 0 : i32
    %c0_i32_0 = arith.constant 0 : i32
    %c0_i32_1 = arith.constant 0 : i32
    return %c0_i32, %c0_i32_0 : i32, i32
  }
  func.func @transform_4(%arg0: i32) -> (i32, i32) {
    %c0_i32 = arith.constant 0 : i32
    %c0_i32_0 = arith.constant 0 : i32
    %c0_i32_1 = arith.constant 0 : i32
    return %c0_i32, %c0_i32_0 : i32, i32
  }
  func.func @transform_5(%arg0: i32) -> (i32, i32) {
    %c0_i32 = arith.constant 0 : i32
    %c0_i32_0 = arith.constant 0 : i32
    %c0_i32_1 = arith.constant 0 : i32
    return %c0_i32, %c0_i32_0 : i32, i32
  }
  func.func @transform_6(%arg0: i32) -> (i32, i32) {
    %c0_i32 = arith.constant 0 : i32
    %c0_i32_0 = arith.constant 0 : i32
    %c0_i32_1 = arith.constant 0 : i32
    return %c0_i32, %c0_i32_0 : i32, i32
  }
  func.func @transform_7(%arg0: i32) -> (i32, i32) {
    %c0_i32 = arith.constant 0 : i32
    %c0_i32_0 = arith.constant 0 : i32
    %c0_i32_1 = arith.constant 0 : i32
    return %c0_i32, %c0_i32_0 : i32, i32
  }
  func.func @transform_8(%arg0: i32) -> (i32, i32) {
    %c0_i32 = arith.constant 0 : i32
    %c0_i32_0 = arith.constant 0 : i32
    %c0_i32_1 = arith.constant 0 : i32
    return %c0_i32, %c0_i32_0 : i32, i32
  }
  func.func @transform_9(%arg0: i32) -> (i32, i32) {
    %c0_i32 = arith.constant 0 : i32
    %c0_i32_0 = arith.constant 0 : i32
    %c0_i32_1 = arith.constant 0 : i32
    return %c0_i32, %c0_i32_0 : i32, i32
  }
  func.func @transform_10(%arg0: i32) -> (i32, i32) {
    %c0_i32 = arith.constant 0 : i32
    %c0_i32_0 = arith.constant 0 : i32
    return %c0_i32, %arg0 : i32, i32
  }
}

</mosaic_0001>

<llo_original>
// kernel: tpu_custom_call.1
$region0: #{tpu_custom_call.1}
  #allocation0 [shape = 'u32[]', space=smem, size = 0x4, offset = 0x4, fixed_abs, tag = 'smem constant byte address 0x4 - core index']
  #allocation1 [shape = 'u32[72,128]{1,0:T(1,128)}', space=vmem, size = 0x9000, scoped, tag = 'internal scratch']
  %s0 = inlined_call_operand.hbm [shape: f32[8,512], index: 0, kind: input, shape index: {}]
  %s1 = inlined_call_operand.vmem [shape: f32[9,512], index: 1, kind: input, shape index: {}]
  %s2 = inlined_call_operand.vmem [shape: bf16[4,8], index: 2, kind: input, shape index: {}]
  %s3 = inlined_call_operand.vmem [shape: f32[4,1], index: 3, kind: input, shape index: {}]
  %s4 = inlined_call_operand.vmem [shape: bf16[36,4], index: 4, kind: input, shape index: {}]
  %s5 = inlined_call_operand.vmem [shape: f32[4,1], index: 5, kind: input, shape index: {}]
  %s6 = inlined_call_operand.vmem [shape: bf16[16,4], index: 6, kind: input, shape index: {}]
  %s7 = inlined_call_operand.vmem [shape: f32[16,1], index: 7, kind: input, shape index: {}]
  %s8 = inlined_call_operand.vmem [shape: bf16[16,8], index: 8, kind: input, shape index: {}]
  %s9 = inlined_call_operand.vmem [shape: f32[16,1], index: 9, kind: input, shape index: {}]
  %s10 = inlined_call_operand.hbm [shape: f32[16,512], index: 10, kind: output, shape index: {}]
  %s11 = sld [smem:[#allocation0]]
  $region54: #{tpu_custom_call.1} parent=0
    _
  %s13 = ssub.s32 1, %s11
  %s14 = scalar_select 0, %s13, %s11
  $region1: #{tpu_custom_call.1} parent=0
    #allocation2 [shape = 'u8[16384]{0}', space=vmem, size = 0x4000, scoped, tag = 'input window, operand 0, single buffered']
    #allocation3 [shape = 's32[1]{0}', space=sflag, size = 0x4, scoped, tag = 'scoped memory for tpu_custom_call.1']
    #allocation4 [shape = 's32[1]{0}', space=sflag, size = 0x4, scoped, tag = 'scoped memory for tpu_custom_call.1']
    #allocation5 [shape = 'u8[32768]{0}', space=vmem, size = 0x8000, scoped, tag = 'output window, operand 0, single buffered']
    %15 = vsyncpa [#allocation3], 0
    %16 = vsyncpa [#allocation4], 0
    // Predicated region
    $region2: #{tpu_custom_call.1} parent=1 // pred_check
      _
    $region3: #{tpu_custom_call.1} parent=1 // pred_check_branch
      %18 = sbr.rel (0) target = $region5
    $region4: #{tpu_custom_call.1} parent=1 // pred_region
      %20 = vsyncadd [#allocation3], 0
      %s22 = sshll.u32 %s0, 4
      %s23 = int_to_ptr.hbm [resolvable:$true] %s22
      %s24 = sshll.u32 [#allocation2], 4
      %s25 = int_to_ptr.vmem [resolvable:$true] %s24
      %27 = dma.hbm_to_vmem [thread:$0]  %s23, 512, %s25, [#allocation3]
    $region5: #{tpu_custom_call.1} parent=1 // pred_fallthru
      _
    // Predicated region
    $region6: #{tpu_custom_call.1} parent=1 // pred_check
      _
    $region7: #{tpu_custom_call.1} parent=1 // pred_check_branch
      %29 = sbr.rel (0) target = $region9
    $region8: #{tpu_custom_call.1} parent=1 // pred_region
      _
    $region9: #{tpu_custom_call.1} parent=1 // pred_fallthru
      _
    // Predicated region
    $region10: #{tpu_custom_call.1} parent=1 // pred_check
      _
    $region11: #{tpu_custom_call.1} parent=1 // pred_check_branch
      %31 = sbr.rel (0) target = $region13
    $region12: #{tpu_custom_call.1} parent=1 // pred_region
      _
    $region13: #{tpu_custom_call.1} parent=1 // pred_fallthru
      _
    // Predicated region
    $region14: #{tpu_custom_call.1} parent=1 // pred_check
      _
    $region15: #{tpu_custom_call.1} parent=1 // pred_check_branch
      %33 = sbr.rel (0) target = $region17
    $region16: #{tpu_custom_call.1} parent=1 // pred_region
      _
    $region17: #{tpu_custom_call.1} parent=1 // pred_fallthru
      _
    // Predicated region
    $region18: #{tpu_custom_call.1} parent=1 // pred_check
      _
    $region19: #{tpu_custom_call.1} parent=1 // pred_check_branch
      %35 = sbr.rel (0) target = $region21
    $region20: #{tpu_custom_call.1} parent=1 // pred_region
      _
    $region21: #{tpu_custom_call.1} parent=1 // pred_fallthru
      _
    // Predicated region
    $region22: #{tpu_custom_call.1} parent=1 // pred_check
      _
    $region23: #{tpu_custom_call.1} parent=1 // pred_check_branch
      %37 = sbr.rel (0) target = $region25
    $region24: #{tpu_custom_call.1} parent=1 // pred_region
      _
    $region25: #{tpu_custom_call.1} parent=1 // pred_fallthru
      _
    // Predicated region
    $region26: #{tpu_custom_call.1} parent=1 // pred_check
      _
    $region27: #{tpu_custom_call.1} parent=1 // pred_check_branch
      %39 = sbr.rel (0) target = $region29
    $region28: #{tpu_custom_call.1} parent=1 // pred_region
      _
    $region29: #{tpu_custom_call.1} parent=1 // pred_fallthru
      _
    // Predicated region
    $region30: #{tpu_custom_call.1} parent=1 // pred_check
      _
    $region31: #{tpu_custom_call.1} parent=1 // pred_check_branch
      %41 = sbr.rel (0) target = $region33
    $region32: #{tpu_custom_call.1} parent=1 // pred_region
      _
    $region33: #{tpu_custom_call.1} parent=1 // pred_fallthru
      _
    // Predicated region
    $region34: #{tpu_custom_call.1} parent=1 // pred_check
      _
    $region35: #{tpu_custom_call.1} parent=1 // pred_check_branch
      %43 = sbr.rel (0) target = $region37
    $region36: #{tpu_custom_call.1} parent=1 // pred_region
      _
    $region37: #{tpu_custom_call.1} parent=1 // pred_fallthru
      _
    // Predicated region
    $region38: #{tpu_custom_call.1} parent=1 // pred_check
      _
    $region39: #{tpu_custom_call.1} parent=1 // pred_check_branch
      %45 = sbr.rel (0) target = $region41
    $region40: #{tpu_custom_call.1} parent=1 // pred_region
      _
    $region41: #{tpu_custom_call.1} parent=1 // pred_fallthru
      _
    // Predicated region
    $region42: #{tpu_custom_call.1} parent=1 // pred_check
      _
    $region43: #{tpu_custom_call.1} parent=1 // pred_check_branch
      %47 = sbr.rel (0) target = $region45
    $region44: #{tpu_custom_call.1} parent=1 // pred_region
      %49 = dma.done [#allocation3], 512
    $region45: #{tpu_custom_call.1} parent=1 // pred_fallthru
      _
    %v51 = vld [vmem:[#allocation2] sm:$0xff]
    %v52 = vld [vmem:[#allocation2 + $0x8] sm:$0xff]
    %v53 = vld [vmem:[#allocation2 + $0x10] sm:$0xff]
    %v54 = vld [vmem:[#allocation2 + $0x18] sm:$0xff]
    %v55 = vpack.c.bf16 %v51, %v51
    %v56 = vpack.c.bf16 %v52, %v52
    %v57 = vpack.c.bf16 %v53, %v53
    %v58 = vpack.c.bf16 %v54, %v54
    %v59 = vld [vmem:[%s2] sm:$0x3]
    %v60 = vld [vmem:[%s3] sm:$0xf]
    %62 = vset.pattern.permute.xlu0 0
    %63 = vperm.xlu0 %62, %v60
    %v64 = vpop.permute.xlu0 %63
    %vm66 = vcmask 64512
    %v68 = vsel %vm66, %v59, 0
    %vm70 = vcmask 1043456
    %v72 = vsel %vm70, %v55, 0
    %v75 = vsel %vm70, %v56, 0
    %v78 = vsel %vm70, %v57, 0
    %v81 = vsel %vm70, %v58, 0
    %83 = vmatpush.bf16.msra.mxu0 0
    %84 = vmatpush.bf16.msra.mxu0 0
    %85 = vmatpush.bf16.msra.mxu0 0
    %86 = vmatpush.bf16.msra.mxu0 0
    %87 = vmatpush.bf16.msra.mxu0 0
    %88 = vmatpush.bf16.msra.mxu0 0
    %89 = vmatpush.bf16.msra.mxu0 0
    %90 = vmatpush.bf16.msra.mxu0 %v72
    %91 = vmatmul.bf16.gmra.mxu0 %v68
    %v92 = vpop.f32.mrf.mxu0
    %v93 = vadd.f32 %v64, %v92
    %v94 = vpop.f32.mrf.mxu0
    %95 = vdwg.mxu0
    %96 = vmatpush.bf16.msra.mxu0 0
    %97 = vmatpush.bf16.msra.mxu0 0
    %98 = vmatpush.bf16.msra.mxu0 0
    %99 = vmatpush.bf16.msra.mxu0 0
    %100 = vmatpush.bf16.msra.mxu0 0
    %101 = vmatpush.bf16.msra.mxu0 0
    %102 = vmatpush.bf16.msra.mxu0 0
    %103 = vmatpush.bf16.msra.mxu0 %v75
    %104 = vmatmul.bf16.gmra.mxu0 %v68
    %v105 = vpop.f32.mrf.mxu0
    %v106 = vadd.f32 %v64, %v105
    %v107 = vpop.f32.mrf.mxu0
    %108 = vdwg.mxu0
    %109 = vmatpush.bf16.msra.mxu0 0
    %110 = vmatpush.bf16.msra.mxu0 0
    %111 = vmatpush.bf16.msra.mxu0 0
    %112 = vmatpush.bf16.msra.mxu0 0
    %113 = vmatpush.bf16.msra.mxu0 0
    %114 = vmatpush.bf16.msra.mxu0 0
    %115 = vmatpush.bf16.msra.mxu0 0
    %116 = vmatpush.bf16.msra.mxu0 %v78
    %117 = vmatmul.bf16.gmra.mxu0 %v68
    %v118 = vpop.f32.mrf.mxu0
    %v119 = vadd.f32 %v64, %v118
    %v120 = vpop.f32.mrf.mxu0
    %121 = vdwg.mxu0
    %122 = vmatpush.bf16.msra.mxu0 0
    %123 = vmatpush.bf16.msra.mxu0 0
    %124 = vmatpush.bf16.msra.mxu0 0
    %125 = vmatpush.bf16.msra.mxu0 0
    %126 = vmatpush.bf16.msra.mxu0 0
    %127 = vmatpush.bf16.msra.mxu0 0
    %128 = vmatpush.bf16.msra.mxu0 0
    %129 = vmatpush.bf16.msra.mxu0 %v81
    %130 = vmatmul.bf16.gmra.mxu0 %v68
    %v131 = vpop.f32.mrf.mxu0
    %v132 = vadd.f32 %v64, %v131
    %v133 = vpop.f32.mrf.mxu0
    %134 = vdwg.mxu0
    %v135 = vsub.f32 0.0, %v93
    %v136 = vsub.f32 0.0, %v106
    %v137 = vsub.f32 0.0, %v119
    %v138 = vsub.f32 0.0, %v132
    %v139 = vmul.f32 %v135, 1.442695
    %v140 = vpow.pop %v139
    %v141 = vmul.f32 %v136, 1.442695
    %v142 = vpow.pop %v141
    %v143 = vmul.f32 %v137, 1.442695
    %v144 = vpow.pop %v143
    %v145 = vmul.f32 %v138, 1.442695
    %v146 = vpow.pop %v145
    %v147 = vadd.f32 %v140, 1.0
    %v148 = vadd.f32 %v142, 1.0
    %v149 = vadd.f32 %v144, 1.0
    %v150 = vadd.f32 %v146, 1.0
    %v151 = vrcp.pop %v147
    %v152 = vrcp.pop %v148
    %v153 = vrcp.pop %v149
    %v154 = vrcp.pop %v150
    %v155 = vmul.f32 %v93, %v151
    %v156 = vmul.f32 %v106, %v152
    %v157 = vmul.f32 %v119, %v153
    %v158 = vmul.f32 %v132, %v154
    %v159 = vld [vmem:[%s4] sm:$0xf]
    %v160 = vld [vmem:[%s4 + $0x4] sm:$0xf]
    %v161 = vld [vmem:[%s4 + $0x8] sm:$0xf]
    %v162 = vld [vmem:[%s4 + $0xc] sm:$0xf]
    %v163 = vld [vmem:[%s4 + $0x10] sm:$0x3]
    %v164 = vpack.c.bf16 %v155, %v155
    %v165 = vpack.c.bf16 %v156, %v156
    %v166 = vpack.c.bf16 %v157, %v157
    %v167 = vpack.c.bf16 %v158, %v158
    %v173 = vunpack.c.l.b16 %v159
    %v174 = vunpack.c.l.b16 %v160
    %v175 = vunpack.c.l.b16 %v161
    %v176 = vunpack.c.l.b16 %v162
    %v177 = vunpack.c.l.b16 %v163
    %v178 = vpack.c.b16 %v174, %v173
    %v179 = vpack.c.b16 %v176, %v175
    %v180 = vpack.c.b16 %v177, %v177
    %vm181 = vcmask 31744
    %v183 = vsel %vm181, %v178, 0
    %v186 = vsel %vm181, %v179, 0
    %v189 = vsel %vm181, %v180, 0
    %vm191 = vcmask 1041408
    %v193 = vsel %vm191, %v164, 0
    %v196 = vsel %vm191, %v165, 0
    %v199 = vsel %vm191, %v166, 0
    %v202 = vsel %vm191, %v167, 0
    %204 = vmatpush.bf16.msra.mxu0 0
    %205 = vmatpush.bf16.msra.mxu0 0
    %206 = vmatpush.bf16.msra.mxu0 0
    %207 = vmatpush.bf16.msra.mxu0 0
    %208 = vmatpush.bf16.msra.mxu0 0
    %209 = vmatpush.bf16.msra.mxu0 0
    %210 = vmatpush.bf16.msra.mxu0 0
    %211 = vmatpush.bf16.msra.mxu0 %v193
    %212 = vmatmul.bf16.gmra.mxu0 %v183
    %v213 = vpop.f32.mrf.mxu0
    %v214 = vadd.f32 0.0, %v213
    %v215 = vpop.f32.mrf.mxu0
    %v216 = vadd.f32 0.0, %v215
    %217 = vmatmul.bf16.gmra.mxu0 %v186
    %v218 = vpop.f32.mrf.mxu0
    %v219 = vadd.f32 0.0, %v218
    %v220 = vpop.f32.mrf.mxu0
    %v221 = vadd.f32 0.0, %v220
    %222 = vmatmul.bf16.gmra.mxu0 %v189
    %v223 = vpop.f32.mrf.mxu0
    %v224 = vadd.f32 0.0, %v223
    %v225 = vpop.f32.mrf.mxu0
    %226 = vdwg.mxu0
    %227 = vmatpush.bf16.msra.mxu0 0
    %228 = vmatpush.bf16.msra.mxu0 0
    %229 = vmatpush.bf16.msra.mxu0 0
    %230 = vmatpush.bf16.msra.mxu0 0
    %231 = vmatpush.bf16.msra.mxu0 0
    %232 = vmatpush.bf16.msra.mxu0 0
    %233 = vmatpush.bf16.msra.mxu0 0
    %234 = vmatpush.bf16.msra.mxu0 %v196
    %235 = vmatmul.bf16.gmra.mxu0 %v183
    %v236 = vpop.f32.mrf.mxu0
    %v237 = vadd.f32 0.0, %v236
    %v238 = vpop.f32.mrf.mxu0
    %v239 = vadd.f32 0.0, %v238
    %240 = vmatmul.bf16.gmra.mxu0 %v186
    %v241 = vpop.f32.mrf.mxu0
    %v242 = vadd.f32 0.0, %v241
    %v243 = vpop.f32.mrf.mxu0
    %v244 = vadd.f32 0.0, %v243
    %245 = vmatmul.bf16.gmra.mxu0 %v189
    %v246 = vpop.f32.mrf.mxu0
    %v247 = vadd.f32 0.0, %v246
    %v248 = vpop.f32.mrf.mxu0
    %249 = vdwg.mxu0
    %250 = vmatpush.bf16.msra.mxu0 0
    %251 = vmatpush.bf16.msra.mxu0 0
    %252 = vmatpush.bf16.msra.mxu0 0
    %253 = vmatpush.bf16.msra.mxu0 0
    %254 = vmatpush.bf16.msra.mxu0 0
    %255 = vmatpush.bf16.msra.mxu0 0
    %256 = vmatpush.bf16.msra.mxu0 0
    %257 = vmatpush.bf16.msra.mxu0 %v199
    %258 = vmatmul.bf16.gmra.mxu0 %v183
    %v259 = vpop.f32.mrf.mxu0
    %v260 = vadd.f32 0.0, %v259
    %v261 = vpop.f32.mrf.mxu0
    %v262 = vadd.f32 0.0, %v261
    %263 = vmatmul.bf16.gmra.mxu0 %v186
    %v264 = vpop.f32.mrf.mxu0
    %v265 = vadd.f32 0.0, %v264
    %v266 = vpop.f32.mrf.mxu0
    %v267 = vadd.f32 0.0, %v266
    %268 = vmatmul.bf16.gmra.mxu0 %v189
    %v269 = vpop.f32.mrf.mxu0
    %v270 = vadd.f32 0.0, %v269
    %v271 = vpop.f32.mrf.mxu0
    %272 = vdwg.mxu0
    %273 = vmatpush.bf16.msra.mxu0 0
    %274 = vmatpush.bf16.msra.mxu0 0
    %275 = vmatpush.bf16.msra.mxu0 0
    %276 = vmatpush.bf16.msra.mxu0 0
    %277 = vmatpush.bf16.msra.mxu0 0
    %278 = vmatpush.bf16.msra.mxu0 0
    %279 = vmatpush.bf16.msra.mxu0 0
    %280 = vmatpush.bf16.msra.mxu0 %v202
    %281 = vmatmul.bf16.gmra.mxu0 %v183
    %v282 = vpop.f32.mrf.mxu0
    %v283 = vadd.f32 0.0, %v282
    %v284 = vpop.f32.mrf.mxu0
    %v285 = vadd.f32 0.0, %v284
    %286 = vmatmul.bf16.gmra.mxu0 %v186
    %v287 = vpop.f32.mrf.mxu0
    %v288 = vadd.f32 0.0, %v287
    %v289 = vpop.f32.mrf.mxu0
    %v290 = vadd.f32 0.0, %v289
    %291 = vmatmul.bf16.gmra.mxu0 %v189
    %v292 = vpop.f32.mrf.mxu0
    %v293 = vadd.f32 0.0, %v292
    %v294 = vpop.f32.mrf.mxu0
    %295 = vdwg.mxu0
    %296 = vrot.lane.b32.xlu0 %v214, 17
    %v297 = vpop.permute.xlu0 %296
    %298 = vrot.lane.b32.xlu0 %v237, 17
    %v299 = vpop.permute.xlu0 %298
    %300 = vrot.lane.b32.xlu0 %v260, 17
    %v301 = vpop.permute.xlu0 %300
    %302 = vrot.lane.b32.xlu0 %v283, 17
    %v303 = vpop.permute.xlu0 %302
    %v304 = vlaneseq
    %v305 = vand.u32 %v304, 127
    %vm306 = vcmp.lt.s32.totalorder %v305, 17
    %v307 = vsel %vm306, %v301, %v303
    %v308 = vsel %vm306, %v299, %v301
    %v309 = vsel %vm306, %v297, %v299
    %v310 = vsel %vm306, %v303, %v297
    %v311 = vld [vmem:[%s1] ss:$8 sm:$0xf]
    %v313 = vperm.slane %v311, 0
    %v314 = vperm.slane %v311, 1
    %v315 = vperm.slane %v311, 2
    %v316 = vperm.slane %v311, 3
    %v321 = vmul.f32 %v310, %v313
    %v322 = vmul.f32 %v309, %v314
    %v323 = vmul.f32 %v308, %v315
    %v324 = vmul.f32 %v307, %v316
    %v325 = vadd.f32 %v219, %v321
    %v326 = vadd.f32 %v242, %v322
    %v327 = vadd.f32 %v265, %v323
    %v328 = vadd.f32 %v288, %v324
    %v333 = vrot.slane %v214, 4
    %v334 = vrot.slane %v237, 4
    %v335 = vrot.slane %v260, 4
    %v336 = vrot.slane %v283, 4
    %341 = vrot.lane.b32.xlu0 %v333, 16
    %v342 = vpop.permute.xlu0 %341
    %343 = vrot.lane.b32.xlu0 %v334, 16
    %v344 = vpop.permute.xlu0 %343
    %345 = vrot.lane.b32.xlu0 %v335, 16
    %v346 = vpop.permute.xlu0 %345
    %347 = vrot.lane.b32.xlu0 %v336, 16
    %v348 = vpop.permute.xlu0 %347
    %vm349 = vcmp.lt.s32.totalorder %v305, 16
    %v350 = vsel %vm349, %v346, %v348
    %v351 = vsel %vm349, %v344, %v346
    %v352 = vsel %vm349, %v342, %v344
    %v353 = vsel %vm349, %v348, %v342
    %s354 = scalar_lea.vmem %s1, 1
    %v355 = vld [vmem:[%s354] ss:$8 sm:$0xf]
    %v357 = vperm.slane %v355, 0
    %v358 = vperm.slane %v355, 1
    %v359 = vperm.slane %v355, 2
    %v360 = vperm.slane %v355, 3
    %v365 = vmul.f32 %v353, %v357
    %v366 = vmul.f32 %v352, %v358
    %v367 = vmul.f32 %v351, %v359
    %v368 = vmul.f32 %v350, %v360
    %v369 = vadd.f32 %v325, %v365
    %v370 = vadd.f32 %v326, %v366
    %v371 = vadd.f32 %v327, %v367
    %v372 = vadd.f32 %v328, %v368
    %373 = vrot.lane.b32.xlu0 %v216, 15
    %v374 = vpop.permute.xlu0 %373
    %375 = vrot.lane.b32.xlu0 %v239, 15
    %v376 = vpop.permute.xlu0 %375
    %377 = vrot.lane.b32.xlu0 %v262, 15
    %v378 = vpop.permute.xlu0 %377
    %379 = vrot.lane.b32.xlu0 %v285, 15
    %v380 = vpop.permute.xlu0 %379
    %vm381 = vcmp.lt.s32.totalorder %v305, 15
    %v382 = vsel %vm381, %v378, %v380
    %v383 = vsel %vm381, %v376, %v378
    %v384 = vsel %vm381, %v374, %v376
    %v385 = vsel %vm381, %v380, %v374
    %s386 = scalar_lea.vmem %s1, 2
    %v387 = vld [vmem:[%s386] ss:$8 sm:$0xf]
    %v389 = vperm.slane %v387, 0
    %v390 = vperm.slane %v387, 1
    %v391 = vperm.slane %v387, 2
    %v392 = vperm.slane %v387, 3
    %v397 = vmul.f32 %v385, %v389
    %v398 = vmul.f32 %v384, %v390
    %v399 = vmul.f32 %v383, %v391
    %v400 = vmul.f32 %v382, %v392
    %v401 = vadd.f32 %v369, %v397
    %v402 = vadd.f32 %v370, %v398
    %v403 = vadd.f32 %v371, %v399
    %v404 = vadd.f32 %v372, %v400
    %v409 = vrot.slane %v216, 4
    %v410 = vrot.slane %v239, 4
    %v411 = vrot.slane %v262, 4
    %v412 = vrot.slane %v285, 4
    %417 = vrot.lane.b32.xlu0 %v409, 1
    %v418 = vpop.permute.xlu0 %417
    %419 = vrot.lane.b32.xlu0 %v410, 1
    %v420 = vpop.permute.xlu0 %419
    %421 = vrot.lane.b32.xlu0 %v411, 1
    %v422 = vpop.permute.xlu0 %421
    %423 = vrot.lane.b32.xlu0 %v412, 1
    %v424 = vpop.permute.xlu0 %423
    %vm425 = vcmp.lt.s32.totalorder %v305, 1
    %v426 = vsel %vm425, %v422, %v424
    %v427 = vsel %vm425, %v420, %v422
    %v428 = vsel %vm425, %v418, %v420
    %v429 = vsel %vm425, %v424, %v418
    %s430 = scalar_lea.vmem %s1, 3
    %v431 = vld [vmem:[%s430] ss:$8 sm:$0xf]
    %v433 = vperm.slane %v431, 0
    %v434 = vperm.slane %v431, 1
    %v435 = vperm.slane %v431, 2
    %v436 = vperm.slane %v431, 3
    %v441 = vmul.f32 %v429, %v433
    %v442 = vmul.f32 %v428, %v434
    %v443 = vmul.f32 %v427, %v435
    %v444 = vmul.f32 %v426, %v436
    %v445 = vadd.f32 %v401, %v441
    %v446 = vadd.f32 %v402, %v442
    %v447 = vadd.f32 %v403, %v443
    %v448 = vadd.f32 %v404, %v444
    %v453 = vrot.slane %v219, 4
    %v454 = vrot.slane %v242, 4
    %v455 = vrot.slane %v265, 4
    %v456 = vrot.slane %v288, 4
    %461 = vrot.lane.b32.xlu0 %v453, 127
    %v462 = vpop.permute.xlu0 %461
    %463 = vrot.lane.b32.xlu0 %v454, 127
    %v464 = vpop.permute.xlu0 %463
    %465 = vrot.lane.b32.xlu0 %v455, 127
    %v466 = vpop.permute.xlu0 %465
    %467 = vrot.lane.b32.xlu0 %v456, 127
    %v468 = vpop.permute.xlu0 %467
    %vm469 = vcmp.lt.s32.totalorder %v305, 127
    %v470 = vsel %vm469, %v466, %v468
    %v471 = vsel %vm469, %v464, %v466
    %v472 = vsel %vm469, %v462, %v464
    %v473 = vsel %vm469, %v468, %v462
    %s474 = scalar_lea.vmem %s1, 5
    %v475 = vld [vmem:[%s474] ss:$8 sm:$0xf]
    %v477 = vperm.slane %v475, 0
    %v478 = vperm.slane %v475, 1
    %v479 = vperm.slane %v475, 2
    %v480 = vperm.slane %v475, 3
    %v485 = vmul.f32 %v472, %v477
    %v486 = vmul.f32 %v471, %v478
    %v487 = vmul.f32 %v470, %v479
    %v488 = vmul.f32 %v473, %v480
    %v489 = vadd.f32 %v445, %v485
    %v490 = vadd.f32 %v446, %v486
    %v491 = vadd.f32 %v447, %v487
    %v492 = vadd.f32 %v448, %v488
    %493 = vrot.lane.b32.xlu0 %v221, 113
    %v494 = vpop.permute.xlu0 %493
    %495 = vrot.lane.b32.xlu0 %v244, 113
    %v496 = vpop.permute.xlu0 %495
    %497 = vrot.lane.b32.xlu0 %v267, 113
    %v498 = vpop.permute.xlu0 %497
    %499 = vrot.lane.b32.xlu0 %v290, 113
    %v500 = vpop.permute.xlu0 %499
    %vm501 = vcmp.lt.s32.totalorder %v305, 113
    %v502 = vsel %vm501, %v498, %v500
    %v503 = vsel %vm501, %v496, %v498
    %v504 = vsel %vm501, %v494, %v496
    %v505 = vsel %vm501, %v500, %v494
    %s506 = scalar_lea.vmem %s1, 6
    %v507 = vld [vmem:[%s506] ss:$8 sm:$0xf]
    %v509 = vperm.slane %v507, 0
    %v510 = vperm.slane %v507, 1
    %v511 = vperm.slane %v507, 2
    %v512 = vperm.slane %v507, 3
    %v517 = vmul.f32 %v504, %v509
    %v518 = vmul.f32 %v503, %v510
    %v519 = vmul.f32 %v502, %v511
    %v520 = vmul.f32 %v505, %v512
    %v521 = vadd.f32 %v489, %v517
    %v522 = vadd.f32 %v490, %v518
    %v523 = vadd.f32 %v491, %v519
    %v524 = vadd.f32 %v492, %v520
    %v529 = vrot.slane %v221, 4
    %v530 = vrot.slane %v244, 4
    %v531 = vrot.slane %v267, 4
    %v532 = vrot.slane %v290, 4
    %537 = vrot.lane.b32.xlu0 %v529, 112
    %v538 = vpop.permute.xlu0 %537
    %539 = vrot.lane.b32.xlu0 %v530, 112
    %v540 = vpop.permute.xlu0 %539
    %541 = vrot.lane.b32.xlu0 %v531, 112
    %v542 = vpop.permute.xlu0 %541
    %543 = vrot.lane.b32.xlu0 %v532, 112
    %v544 = vpop.permute.xlu0 %543
    %vm545 = vcmp.lt.s32.totalorder %v305, 112
    %v546 = vsel %vm545, %v542, %v544
    %v547 = vsel %vm545, %v540, %v542
    %v548 = vsel %vm545, %v538, %v540
    %v549 = vsel %vm545, %v544, %v538
    %s550 = scalar_lea.vmem %s1, 7
    %v551 = vld [vmem:[%s550] ss:$8 sm:$0xf]
    %v553 = vperm.slane %v551, 0
    %v554 = vperm.slane %v551, 1
    %v555 = vperm.slane %v551, 2
    %v556 = vperm.slane %v551, 3
    %v561 = vmul.f32 %v548, %v553
    %v562 = vmul.f32 %v547, %v554
    %v563 = vmul.f32 %v546, %v555
    %v564 = vmul.f32 %v549, %v556
    %v565 = vadd.f32 %v521, %v561
    %v566 = vadd.f32 %v522, %v562
    %v567 = vadd.f32 %v523, %v563
    %v568 = vadd.f32 %v524, %v564
    %569 = vrot.lane.b32.xlu0 %v224, 111
    %v570 = vpop.permute.xlu0 %569
    %571 = vrot.lane.b32.xlu0 %v247, 111
    %v572 = vpop.permute.xlu0 %571
    %573 = vrot.lane.b32.xlu0 %v270, 111
    %v574 = vpop.permute.xlu0 %573
    %575 = vrot.lane.b32.xlu0 %v293, 111
    %v576 = vpop.permute.xlu0 %575
    %vm577 = vcmp.lt.s32.totalorder %v305, 111
    %v578 = vsel %vm577, %v574, %v576
    %v579 = vsel %vm577, %v572, %v574
    %v580 = vsel %vm577, %v570, %v572
    %v581 = vsel %vm577, %v576, %v570
    %s582 = scalar_lea.vmem %s1, 32
    %v583 = vld [vmem:[%s582] ss:$8 sm:$0xf]
    %v585 = vperm.slane %v583, 0
    %v586 = vperm.slane %v583, 1
    %v587 = vperm.slane %v583, 2
    %v588 = vperm.slane %v583, 3
    %v593 = vmul.f32 %v580, %v585
    %v594 = vmul.f32 %v579, %v586
    %v595 = vmul.f32 %v578, %v587
    %v596 = vmul.f32 %v581, %v588
    %v597 = vadd.f32 %v565, %v593
    %v598 = vadd.f32 %v566, %v594
    %v599 = vadd.f32 %v567, %v595
    %v600 = vadd.f32 %v568, %v596
    %v601 = vld [vmem:[%s5] sm:$0xf]
    %603 = vset.pattern.permute.xlu0 0
    %604 = vperm.xlu0 %603, %v601
    %v605 = vpop.permute.xlu0 %604
    %v607 = vadd.f32 %v597, %v605
    %v608 = vadd.f32 %v598, %v605
    %v609 = vadd.f32 %v599, %v605
    %v610 = vadd.f32 %v600, %v605
    %v611 = vsub.f32 0.0, %v607
    %v612 = vsub.f32 0.0, %v608
    %v613 = vsub.f32 0.0, %v609
    %v614 = vsub.f32 0.0, %v610
    %v615 = vmul.f32 %v611, 1.442695
    %v616 = vpow.pop %v615
    %v617 = vmul.f32 %v612, 1.442695
    %v618 = vpow.pop %v617
    %v619 = vmul.f32 %v613, 1.442695
    %v620 = vpow.pop %v619
    %v621 = vmul.f32 %v614, 1.442695
    %v622 = vpow.pop %v621
    %v623 = vadd.f32 %v616, 1.0
    %v624 = vadd.f32 %v618, 1.0
    %v625 = vadd.f32 %v620, 1.0
    %v626 = vadd.f32 %v622, 1.0
    %v627 = vrcp.pop %v623
    %v628 = vrcp.pop %v624
    %v629 = vrcp.pop %v625
    %v630 = vrcp.pop %v626
    %v631 = vmul.f32 %v607, %v627
    %v632 = vmul.f32 %v608, %v628
    %v633 = vmul.f32 %v609, %v629
    %v634 = vmul.f32 %v610, %v630
    %v635 = vld [vmem:[%s6] sm:$0xf]
    %v636 = vld [vmem:[%s6 + $0x4] sm:$0xf]
    %v637 = vpack.c.bf16 %v631, %v631
    %v638 = vpack.c.bf16 %v632, %v632
    %v639 = vpack.c.bf16 %v633, %v633
    %v640 = vpack.c.bf16 %v634, %v634
    %v641 = vld [vmem:[%s7] sm:$0xff]
    %v642 = vld [vmem:[%s7 + $0x8] sm:$0xff]
    %644 = vset.pattern.permute.xlu0 0
    %645 = vperm.xlu0 %644, %v641
    %v646 = vpop.permute.xlu0 %645
    %649 = vset.pattern.permute.xlu0 0
    %650 = vperm.xlu0 %649, %v642
    %v651 = vpop.permute.xlu0 %650
    %v655 = vunpack.c.l.b16 %v635
    %v656 = vunpack.c.l.b16 %v636
    %v657 = vpack.c.b16 %v656, %v655
    %v659 = vsel %vm181, %v657, 0
    %v662 = vsel %vm191, %v637, 0
    %v665 = vsel %vm191, %v638, 0
    %v668 = vsel %vm191, %v639, 0
    %v671 = vsel %vm191, %v640, 0
    %673 = vmatpush.bf16.msra.mxu0 0
    %674 = vmatpush.bf16.msra.mxu0 0
    %675 = vmatpush.bf16.msra.mxu0 0
    %676 = vmatpush.bf16.msra.mxu0 0
    %677 = vmatpush.bf16.msra.mxu0 0
    %678 = vmatpush.bf16.msra.mxu0 0
    %679 = vmatpush.bf16.msra.mxu0 0
    %680 = vmatpush.bf16.msra.mxu0 %v662
    %681 = vmatmul.bf16.gmra.mxu0 %v659
    %v682 = vpop.f32.mrf.mxu0
    %v683 = vadd.f32 %v646, %v682
    %v684 = vpop.f32.mrf.mxu0
    %v685 = vadd.f32 %v651, %v684
    %686 = vdwg.mxu0
    %687 = vmatpush.bf16.msra.mxu0 0
    %688 = vmatpush.bf16.msra.mxu0 0
    %689 = vmatpush.bf16.msra.mxu0 0
    %690 = vmatpush.bf16.msra.mxu0 0
    %691 = vmatpush.bf16.msra.mxu0 0
    %692 = vmatpush.bf16.msra.mxu0 0
    %693 = vmatpush.bf16.msra.mxu0 0
    %694 = vmatpush.bf16.msra.mxu0 %v665
    %695 = vmatmul.bf16.gmra.mxu0 %v659
    %v696 = vpop.f32.mrf.mxu0
    %v697 = vadd.f32 %v646, %v696
    %v698 = vpop.f32.mrf.mxu0
    %v699 = vadd.f32 %v651, %v698
    %700 = vdwg.mxu0
    %701 = vmatpush.bf16.msra.mxu0 0
    %702 = vmatpush.bf16.msra.mxu0 0
    %703 = vmatpush.bf16.msra.mxu0 0
    %704 = vmatpush.bf16.msra.mxu0 0
    %705 = vmatpush.bf16.msra.mxu0 0
    %706 = vmatpush.bf16.msra.mxu0 0
    %707 = vmatpush.bf16.msra.mxu0 0
    %708 = vmatpush.bf16.msra.mxu0 %v668
    %709 = vmatmul.bf16.gmra.mxu0 %v659
    %v710 = vpop.f32.mrf.mxu0
    %v711 = vadd.f32 %v646, %v710
    %v712 = vpop.f32.mrf.mxu0
    %v713 = vadd.f32 %v651, %v712
    %714 = vdwg.mxu0
    %715 = vmatpush.bf16.msra.mxu0 0
    %716 = vmatpush.bf16.msra.mxu0 0
    %717 = vmatpush.bf16.msra.mxu0 0
    %718 = vmatpush.bf16.msra.mxu0 0
    %719 = vmatpush.bf16.msra.mxu0 0
    %720 = vmatpush.bf16.msra.mxu0 0
    %721 = vmatpush.bf16.msra.mxu0 0
    %722 = vmatpush.bf16.msra.mxu0 %v671
    %723 = vmatmul.bf16.gmra.mxu0 %v659
    %v724 = vpop.f32.mrf.mxu0
    %v725 = vadd.f32 %v646, %v724
    %v726 = vpop.f32.mrf.mxu0
    %v727 = vadd.f32 %v651, %v726
    %728 = vdwg.mxu0
    %v729 = vld [vmem:[%s8] sm:$0xf]
    %v730 = vld [vmem:[%s8 + $0x4] sm:$0xf]
    %v731 = vld [vmem:[%s9] sm:$0xff]
    %v732 = vld [vmem:[%s9 + $0x8] sm:$0xff]
    %734 = vset.pattern.permute.xlu0 0
    %735 = vperm.xlu0 %734, %v731
    %v736 = vpop.permute.xlu0 %735
    %739 = vset.pattern.permute.xlu0 0
    %740 = vperm.xlu0 %739, %v732
    %v741 = vpop.permute.xlu0 %740
    %v745 = vunpack.c.l.b16 %v729
    %v746 = vunpack.c.l.b16 %v730
    %v747 = vpack.c.b16 %v746, %v745
    %v749 = vsel %vm66, %v747, 0
    %751 = vmatpush.bf16.msra.mxu0 0
    %752 = vmatpush.bf16.msra.mxu0 0
    %753 = vmatpush.bf16.msra.mxu0 0
    %754 = vmatpush.bf16.msra.mxu0 0
    %755 = vmatpush.bf16.msra.mxu0 0
    %756 = vmatpush.bf16.msra.mxu0 0
    %757 = vmatpush.bf16.msra.mxu0 0
    %758 = vmatpush.bf16.msra.mxu0 %v72
    %759 = vmatmul.bf16.gmra.mxu0 %v749
    %v760 = vpop.f32.mrf.mxu0
    %v761 = vadd.f32 %v736, %v760
    %v762 = vpop.f32.mrf.mxu0
    %v763 = vadd.f32 %v741, %v762
    %764 = vdwg.mxu0
    %765 = vmatpush.bf16.msra.mxu0 0
    %766 = vmatpush.bf16.msra.mxu0 0
    %767 = vmatpush.bf16.msra.mxu0 0
    %768 = vmatpush.bf16.msra.mxu0 0
    %769 = vmatpush.bf16.msra.mxu0 0
    %770 = vmatpush.bf16.msra.mxu0 0
    %771 = vmatpush.bf16.msra.mxu0 0
    %772 = vmatpush.bf16.msra.mxu0 %v75
    %773 = vmatmul.bf16.gmra.mxu0 %v749
    %v774 = vpop.f32.mrf.mxu0
    %v775 = vadd.f32 %v736, %v774
    %v776 = vpop.f32.mrf.mxu0
    %v777 = vadd.f32 %v741, %v776
    %778 = vdwg.mxu0
    %779 = vmatpush.bf16.msra.mxu0 0
    %780 = vmatpush.bf16.msra.mxu0 0
    %781 = vmatpush.bf16.msra.mxu0 0
    %782 = vmatpush.bf16.msra.mxu0 0
    %783 = vmatpush.bf16.msra.mxu0 0
    %784 = vmatpush.bf16.msra.mxu0 0
    %785 = vmatpush.bf16.msra.mxu0 0
    %786 = vmatpush.bf16.msra.mxu0 %v78
    %787 = vmatmul.bf16.gmra.mxu0 %v749
    %v788 = vpop.f32.mrf.mxu0
    %v789 = vadd.f32 %v736, %v788
    %v790 = vpop.f32.mrf.mxu0
    %v791 = vadd.f32 %v741, %v790
    %792 = vdwg.mxu0
    %793 = vmatpush.bf16.msra.mxu0 0
    %794 = vmatpush.bf16.msra.mxu0 0
    %795 = vmatpush.bf16.msra.mxu0 0
    %796 = vmatpush.bf16.msra.mxu0 0
    %797 = vmatpush.bf16.msra.mxu0 0
    %798 = vmatpush.bf16.msra.mxu0 0
    %799 = vmatpush.bf16.msra.mxu0 0
    %800 = vmatpush.bf16.msra.mxu0 %v81
    %801 = vmatmul.bf16.gmra.mxu0 %v749
    %v802 = vpop.f32.mrf.mxu0
    %v803 = vadd.f32 %v736, %v802
    %v804 = vpop.f32.mrf.mxu0
    %v805 = vadd.f32 %v741, %v804
    %806 = vdwg.mxu0
    %v807 = vadd.f32 %v683, %v761
    %v808 = vadd.f32 %v697, %v775
    %v809 = vadd.f32 %v711, %v789
    %v810 = vadd.f32 %v725, %v803
    %v811 = vadd.f32 %v685, %v763
    %v812 = vadd.f32 %v699, %v777
    %v813 = vadd.f32 %v713, %v791
    %v814 = vadd.f32 %v727, %v805
    %v815 = vmax.f32 %v807, 0.0
    %v816 = vmax.f32 %v808, 0.0
    %v817 = vmax.f32 %v809, 0.0
    %v818 = vmax.f32 %v810, 0.0
    %v819 = vmax.f32 %v811, 0.0
    %v820 = vmax.f32 %v812, 0.0
    %v821 = vmax.f32 %v813, 0.0
    %v822 = vmax.f32 %v814, 0.0
    %823 = vst [vmem:[#allocation5] sm:$0xff] %v815
    %824 = vst [vmem:[#allocation5 + $0x8] sm:$0xff] %v816
    %825 = vst [vmem:[#allocation5 + $0x10] sm:$0xff] %v817
    %826 = vst [vmem:[#allocation5 + $0x18] sm:$0xff] %v818
    %827 = vst [vmem:[#allocation5 + $0x20] sm:$0xff] %v819
    %828 = vst [vmem:[#allocation5 + $0x28] sm:$0xff] %v820
    %829 = vst [vmem:[#allocation5 + $0x30] sm:$0xff] %v821
    %830 = vst [vmem:[#allocation5 + $0x38] sm:$0xff] %v822
    // Predicated region
    $region46: #{tpu_custom_call.1} parent=1 // pred_check
      _
    $region47: #{tpu_custom_call.1} parent=1 // pred_check_branch
      %832 = sbr.rel (0) target = $region49
    $region48: #{tpu_custom_call.1} parent=1 // pred_region
      %834 = vsyncadd [#allocation4], 0
      %s835 = sshll.u32 [#allocation5], 4
      %s836 = int_to_ptr.vmem [resolvable:$true] %s835
      %s837 = sshll.u32 %s10, 4
      %s838 = int_to_ptr.hbm [resolvable:$true] %s837
      %843 = dma.vmem_to_hbm [thread:$0]  %s836, 1024, %s838, [#allocation4], 512, 512, 32
    $region49: #{tpu_custom_call.1} parent=1 // pred_fallthru
      _
    // Predicated region
    $region50: #{tpu_custom_call.1} parent=1 // pred_check
      _
    $region51: #{tpu_custom_call.1} parent=1 // pred_check_branch
      %845 = sbr.rel (0) target = $region53
    $region52: #{tpu_custom_call.1} parent=1 // pred_region
      %847 = dma.done [#allocation4], 1024
    $region53: #{tpu_custom_call.1} parent=1 // pred_fallthru
      _
    %848 = vsyncpa [#allocation3], 1
    %849 = vsyncpa [#allocation4], 1

</llo_original>
